<compile_context>
chip_gen: v7x
topology: tpu7x:2x2x1
jax: 0.10.0
libtpu: 0.0.40
codegen_flags: <defaults>
</compile_context>

<pallas_src>
import functools

import jax
import jax.numpy as jnp
from jax import lax
from jax.experimental import pallas as pl
from jax.experimental.pallas import tpu as pltpu


def _round_up(x, m):
    return ((x + m - 1) // m) * m


def _tpu_generation():
    """Best-effort TPU generation detection ('v7x' | 'v6e' | 'v5e' | 'unknown')."""
    try:
        kind = jax.devices()[0].device_kind.lower()
    except Exception:
        return "unknown"
    if "7" in kind:
        return "v7x"
    if "v6" in kind:
        return "v6e"
    if "v5" in kind:
        return "v5e"
    return "unknown"


def _choose_tiling(R, W, itemsize, gen):
    """Pick (tile_rows, grid_steps, sublane_mult) for an (R, W) cache build."""
    # dtype-aware sublane multiple: f32 -> 8, bf16/f16 -> 16, int8/fp8 -> 32
    sub = {4: 8, 2: 16, 1: 32}.get(itemsize, 8)
    bytes_per_row = W * itemsize

    if gen == "v7x":
        cap_bytes = 4 << 20     # per-output tile cap (2 out x 2 buf = 16 MiB < 32 MiB scoped)
        max_rows = 8192
    else:                       # v6e / v5e / unknown: ~1 MiB tiles are on-roofline
        cap_bytes = 1 << 20
        max_rows = 2048

    rows_by_vmem = max(sub, ((cap_bytes // bytes_per_row) // sub) * sub)
    tile_rows = min(max_rows, rows_by_vmem)

    if R <= tile_rows:
        if gen == "v7x" and R >= 512:
            # split into 2 "parallel" steps so both TensorCores get work
            tile_rows = max(sub, _round_up(-(-R // 2), sub))
            grid_steps = 2
        else:
            # single-TC chips (and tiny caches): one step, no artificial split
            tile_rows = max(sub, _round_up(R, sub))
            grid_steps = 1
    else:
        grid_steps = -(-R // tile_rows)
        if gen == "v7x" and grid_steps % 2 == 1 and grid_steps > 1:
            # rebalance to an even step count for megacore (minimal padding)
            grid_steps += 1
            tile_rows = max(sub, _round_up(-(-R // grid_steps), sub))

    return tile_rows, grid_steps, sub


def _rope_cache_kernel(scale_ref, phase_ref, cos_ref, sin_ref, *,
                       chunk_rows, n_chunks, rem):
    """Compute one (tile_rows, W) lane-packed block of the cos/sin caches.

    scale_ref : (1, W) f32 == r * inv_freq[(lane % D) % hd]
    phase_ref : (1, W) f32 == (lane // D) * inv_freq[(lane % D) % hd]
    cos_ref / sin_ref : (tile_rows, W) in the output dtype.

    Packed row g holds positions [g*r, g*r + r); for lane l the position
    offset is l // D and the (duplicated) frequency index is (l % D) % hd, so
        emb[s, l] = (g*r + l//D) * inv_freq[(l%D)%hd] = g*scale[l] + phase[l]
    The duplication is already baked into scale/phase -> no in-kernel concat.
    """
    tile_rows = cos_ref.shape[0]
    base = pl.program_id(0) * tile_rows
    scale = scale_ref[...]      # (1, W) f32, loaded once per step
    phase = phase_ref[...]

    def emit(start, rows):
        row = lax.broadcasted_iota(jnp.int32, (rows, 1), 0) + (base + start)
        emb = row.astype(jnp.float32) * scale + phase
        cos_ref[pl.ds(start, rows), :] = jnp.cos(emb).astype(cos_ref.dtype)
        sin_ref[pl.ds(start, rows), :] = jnp.sin(emb).astype(sin_ref.dtype)

    if n_chunks > 0:
        def body(c, carry):
            start = pl.multiple_of(c * chunk_rows, chunk_rows)
            emit(start, chunk_rows)
            return carry
        lax.fori_loop(0, n_chunks, body, 0)
    if rem > 0:
        emit(n_chunks * chunk_rows, rem)


def _build_cos_sin_cache(inv_freq, seq_len, out_dtype=jnp.float32):
    """Pallas-computed (padded_seq, D) cos/sin caches.

    Rows beyond `seq_len` hold valid values for the corresponding (larger)
    positions, so the padded cache can be kept as-is (no slice copy).
    """
    inv_freq = inv_freq.astype(jnp.float32)
    hd = int(inv_freq.shape[0])            # dim // 2 unique frequencies
    D = 2 * hd                             # cache width (== 2*(dim//2), as in PyTorch)
    r = max(1, 128 // D)                   # positions packed per output row (lane-dense)
    W = r * D                              # output lane width (128 for dim=32)
    # NOTE: if D < 128 and D does not divide 128 (e.g. dim=96), r=1 and W=D<128
    # -> stores become masked; still correct, just a perf edge case.

    out_dtype = jnp.dtype(out_dtype)
    itemsize = out_dtype.itemsize
    R = -(-seq_len // r)                   # packed rows needed

    gen = _tpu_generation()
    tile_rows, grid_steps, _sub = _choose_tiling(R, W, itemsize, gen)
    R_pad = grid_steps * tile_rows

    # Inner sub-chunking keeps the elementwise chain in the vreg file
    # (128 x 128 f32 = 16 vregs per stage) while the DMA block stays large.
    chunk_rows = 128
    n_chunks = tile_rows // chunk_rows
    rem = tile_rows % chunk_rows

    # Full-width per-lane constants with the cat(freqs, freqs) duplication
    # baked in (so the kernel needs no concatenate / lane shuffles).
    lane = jnp.arange(W)
    inv_lane = inv_freq[(lane % D) % hd]                               # (W,)
    scale = (float(r) * inv_lane).reshape(1, W)
    phase = ((lane // D).astype(jnp.float32) * inv_lane).reshape(1, W)

    # Explicit VMEM limit (2 outputs x 2 pipeline buffers + small inputs).
    vmem_needed = 4 * tile_rows * W * itemsize + 4 * W * 4 + (1 << 16)
    vmem_limit = int(min(max(vmem_needed + (8 << 20), 16 << 20), 32 << 20))

    kernel = functools.partial(_rope_cache_kernel,
                               chunk_rows=chunk_rows, n_chunks=n_chunks, rem=rem)
    cos_p, sin_p = pl.pallas_call(
        kernel,
        out_shape=(jax.ShapeDtypeStruct((R_pad, W), out_dtype),
                   jax.ShapeDtypeStruct((R_pad, W), out_dtype)),
        grid_spec=pltpu.PrefetchScalarGridSpec(
            num_scalar_prefetch=0,
            grid=(grid_steps,),
            in_specs=[pl.BlockSpec((1, W), lambda i: (0, 0)),
                      pl.BlockSpec((1, W), lambda i: (0, 0))],
            out_specs=[pl.BlockSpec((tile_rows, W), lambda i: (i, 0)),
                       pl.BlockSpec((tile_rows, W), lambda i: (i, 0))],
        ),
        compiler_params=pltpu.CompilerParams(
            dimension_semantics=("parallel",),
            vmem_limit_bytes=vmem_limit),
    )(scale, phase)

    padded_seq = R_pad * r
    # Row-major contiguous reshape back to (padded_seq, D) -- effectively free.
    cos = cos_p.reshape(padded_seq, D)
    sin = sin_p.reshape(padded_seq, D)
    return cos, sin, padded_seq


class RotaryEmbedding:
    """JAX/Pallas port of mmfreelm's RotaryEmbedding (forward pass only)."""

    def __init__(self, dim, max_position_embeddings=2048, base=10000,
                 use_ternary=True, key=None):
        print(f"\n[RotaryEmbedding] Initialized with: dim={dim}, "
              f"max_pos={max_position_embeddings}, base={base}, "
              f"ternary={use_ternary}\n")
        self.dim = dim
        self.max_position_embeddings = max_position_embeddings
        self.base = base
        self.use_ternary = use_ternary

        inv_freq_cont = 1.0 / (base ** (jnp.arange(0, dim, 2, dtype=jnp.float32) / dim))
        if use_ternary:
            # deterministic synthetic init: bernoulli(|inv_freq|) * sign(inv_freq)
            # (inv_freq > 0, so sign == 1 and values are in {0., 1.})
            if key is None:
                key = jax.random.PRNGKey(0)
            u = jax.random.uniform(key, inv_freq_cont.shape, dtype=jnp.float32)
            self.inv_freq = (u < inv_freq_cont).astype(jnp.float32)
        else:
            self.inv_freq = inv_freq_cont

        # default cache dtype mirrors torch.get_default_dtype() == float32
        self._set_cos_sin_cache(seq_len=max_position_embeddings,
                                dtype=jnp.float32)

    def _set_cos_sin_cache(self, seq_len, dtype):
        cos, sin, padded = _build_cos_sin_cache(self.inv_freq, seq_len,
                                                out_dtype=dtype)
        self.cos_cached = cos
        self.sin_cached = sin
        # padded rows contain valid cos/sin for those (larger) positions, so the
        # full padded capacity counts as cached -> fewer regrows, no slice copy.
        self.max_seq_len_cached = padded

    def __call__(self, x, seq_len=None):
        if seq_len is None:
            seq_len = x.shape[-2]
        if seq_len > self.max_seq_len_cached:
            # regrow: emit the cache directly in the consumer dtype
            self._set_cos_sin_cache(seq_len, x.dtype)
        dt = jnp.dtype(x.dtype)
        # Slice BEFORE any cast so we never run a full-padded-cache cast pass.
        cos = self.cos_cached[:seq_len]
        sin = self.sin_cached[:seq_len]
        if self.cos_cached.dtype != dt:
            cos = cos.astype(dt)
            sin = sin.astype(dt)
        return cos, sin


if __name__ == "__main__":
    key = jax.random.PRNGKey(0)
    k_init, k_x = jax.random.split(key)

    dim = 32
    max_pos = 128
    batch, seq = 2, 8

    rope = RotaryEmbedding(dim=dim, max_position_embeddings=max_pos,
                           base=10000, use_ternary=True, key=k_init)

    # layout: x is (batch, seq, dim); only seq (axis -2) and dtype are consumed.
    x = jax.random.normal(k_x, (batch, seq, dim), dtype=jnp.float32)

    cos, sin = rope(x)
    jax.block_until_ready((cos, sin))

    # reference check against plain JAX
    t = jnp.arange(seq, dtype=jnp.float32)
    freqs = jnp.outer(t, rope.inv_freq)
    emb = jnp.concatenate([freqs, freqs], axis=-1)
    assert cos.shape == (seq, dim) and sin.shape == (seq, dim)
    assert jnp.allclose(cos, jnp.cos(emb), atol=1e-5)
    assert jnp.allclose(sin, jnp.sin(emb), atol=1e-5)

    # check the full cached (padded) range against the reference as well
    full = rope.max_seq_len_cached
    tf = jnp.arange(full, dtype=jnp.float32)
    freqs_f = jnp.outer(tf, rope.inv_freq)
    emb_f = jnp.concatenate([freqs_f, freqs_f], axis=-1)
    assert jnp.allclose(rope.cos_cached, jnp.cos(emb_f), atol=1e-5)
    assert jnp.allclose(rope.sin_cached, jnp.sin(emb_f), atol=1e-5)

    # second call exercises the cached path
    cos2, sin2 = rope(x)
    jax.block_until_ready((cos2, sin2))
    assert jnp.array_equal(cos, cos2) and jnp.array_equal(sin, sin2)

    print("KERNEL_OK")
</pallas_src>

<mosaic_0001>
module attributes {stable_mosaic.version = 11 : i64} {
  func.func @_rope_cache_kernel(%arg0: i32, %arg1: memref<1x128xf32, #tpu.memory_space<vmem>>, %arg2: memref<1x128xf32, #tpu.memory_space<vmem>>, %arg3: memref<32x128xf32, #tpu.memory_space<vmem>>, %arg4: memref<32x128xf32, #tpu.memory_space<vmem>>) attributes {dimension_semantics = [#tpu.dimension_semantics<parallel>], iteration_bounds = array<i64: 1>, scalar_prefetch = 0 : i64, scratch_operands = 0 : i64, tpu.core_type = #tpu.core_type<tc>, window_params = [{pipeline_mode = #tpu.pipeline_mode<synchronous>, transform_indices = @transform_0, window_bounds = array<i64: 1, 128>}, {pipeline_mode = #tpu.pipeline_mode<synchronous>, transform_indices = @transform_1, window_bounds = array<i64: 1, 128>}, {transform_indices = @transform_2, window_bounds = array<i64: 32, 128>}, {transform_indices = @transform_3, window_bounds = array<i64: 32, 128>}]} {
    %c32_i32 = arith.constant 32 : i32
    %0 = arith.muli %arg0, %c32_i32 : i32
    %c0 = arith.constant 0 : index
    %c0_0 = arith.constant 0 : index
    %1 = vector.load %arg1[%c0, %c0_0] : memref<1x128xf32, #tpu.memory_space<vmem>>, vector<1x128xf32>
    %c0_1 = arith.constant 0 : index
    %c0_2 = arith.constant 0 : index
    %2 = vector.load %arg2[%c0_1, %c0_2] : memref<1x128xf32, #tpu.memory_space<vmem>>, vector<1x128xf32>
    %3 = tpu.iota {dimensions = array<i32: 0>} : vector<32x1xi32>
    %c0_i32 = arith.constant 0 : i32
    %4 = arith.addi %0, %c0_i32 : i32
    %5 = vector.broadcast %4 : i32 to vector<32x1xi32>
    %6 = arith.addi %3, %5 : vector<32x1xi32>
    %7 = arith.sitofp %6 : vector<32x1xi32> to vector<32x1xf32>
    %8 = vector.broadcast %7 : vector<32x1xf32> to vector<32x128xf32>
    %9 = vector.broadcast %1 : vector<1x128xf32> to vector<32x128xf32>
    %10 = arith.mulf %8, %9 : vector<32x128xf32>
    %11 = vector.broadcast %2 : vector<1x128xf32> to vector<32x128xf32>
    %12 = arith.addf %10, %11 : vector<32x128xf32>
    %13 = math.cos %12 : vector<32x128xf32>
    %c0_3 = arith.constant 0 : index
    %c0_4 = arith.constant 0 : index
    %14 = vector.load %arg3[%c0_3, %c0_4] : memref<32x128xf32, #tpu.memory_space<vmem>>, vector<32x128xf32>
    tpu.vector_store %arg3[%c0_3, %c0_4], %13 {strides = array<i32>} : memref<32x128xf32, #tpu.memory_space<vmem>>, vector<32x128xf32>,
    %15 = math.sin %12 : vector<32x128xf32>
    %c0_5 = arith.constant 0 : index
    %c0_6 = arith.constant 0 : index
    %16 = vector.load %arg4[%c0_5, %c0_6] : memref<32x128xf32, #tpu.memory_space<vmem>>, vector<32x128xf32>
    tpu.vector_store %arg4[%c0_5, %c0_6], %15 {strides = array<i32>} : memref<32x128xf32, #tpu.memory_space<vmem>>, vector<32x128xf32>,
    return
  }
  func.func @transform_0(%arg0: i32) -> (i32, i32) {
    %c0_i32 = arith.constant 0 : i32
    %c0_i32_0 = arith.constant 0 : i32
    %c0_i32_1 = arith.constant 0 : i32
    return %c0_i32, %c0_i32_0 : i32, i32
  }
  func.func @transform_1(%arg0: i32) -> (i32, i32) {
    %c0_i32 = arith.constant 0 : i32
    %c0_i32_0 = arith.constant 0 : i32
    %c0_i32_1 = arith.constant 0 : i32
    return %c0_i32, %c0_i32_0 : i32, i32
  }
  func.func @transform_2(%arg0: i32) -> (i32, i32) {
    %c0_i32 = arith.constant 0 : i32
    %c0_i32_0 = arith.constant 0 : i32
    return %arg0, %c0_i32 : i32, i32
  }
  func.func @transform_3(%arg0: i32) -> (i32, i32) {
    %c0_i32 = arith.constant 0 : i32
    %c0_i32_0 = arith.constant 0 : i32
    return %arg0, %c0_i32 : i32, i32
  }
}

</mosaic_0001>

<llo_original>
// kernel: tpu_custom_call.1
$region0: #{tpu_custom_call.1}
  #allocation0 [shape = 'u32[]', space=smem, size = 0x4, offset = 0x4, fixed_abs, tag = 'smem constant byte address 0x4 - core index']
  #allocation1 [shape = 'u32[144,128]{1,0:T(1,128)}', space=vmem, size = 0x12000, scoped, tag = 'internal scratch']
  %s0 = inlined_call_operand.hbm [shape: f32[1,128], index: 0, kind: input, shape index: {}]
  %s1 = inlined_call_operand.vmem [shape: f32[1,128], index: 1, kind: input, shape index: {}]
  %s2 = inlined_call_operand.hbm [shape: f32[32,128], index: 2, kind: output, shape index: {0}]
  %s3 = inlined_call_operand.hbm [shape: f32[32,128], index: 3, kind: output, shape index: {1}]
  %4 = xla_tuple %s2, %s3
  %s5 = sld [smem:[#allocation0]]
  $region30: #{tpu_custom_call.1} parent=0
    _
  %s7 = ssub.s32 1, %s5
  %s8 = scalar_select 0, %s7, %s5
  $region1: #{tpu_custom_call.1} parent=0
    #allocation2 [shape = 'u8[512]{0}', space=vmem, size = 0x400, scoped, tag = 'input window, operand 0, single buffered']
    #allocation3 [shape = 's32[1]{0}', space=sflag, size = 0x4, scoped, tag = 'scoped memory for tpu_custom_call.1']
    #allocation4 [shape = 's32[1]{0}', space=sflag, size = 0x4, scoped, tag = 'scoped memory for tpu_custom_call.1']
    #allocation5 [shape = 'u8[16384]{0}', space=vmem, size = 0x4000, scoped, tag = 'output window, operand 0, single buffered']
    #allocation6 [shape = 'u8[16384]{0}', space=vmem, size = 0x4000, scoped, tag = 'output window, operand 1, single buffered']
    #allocation7 [shape = 's32[1]{0}', space=sflag, size = 0x4, scoped, tag = 'scoped memory for tpu_custom_call.1']
    %9 = vsyncpa [#allocation3], 0
    %10 = vsyncpa [#allocation4], 0
    %11 = vsyncpa [#allocation7], 0
    // Predicated region
    $region2: #{tpu_custom_call.1} parent=1 // pred_check
      _
    $region3: #{tpu_custom_call.1} parent=1 // pred_check_branch
      %13 = sbr.rel (0) target = $region5
    $region4: #{tpu_custom_call.1} parent=1 // pred_region
      %s15 = ssub.s32 16, 16
      %16 = vsyncadd [#allocation3], %s15
      %s18 = sshll.u32 [#allocation2], 4
      %s19 = int_to_ptr.vmem [resolvable:$true] %s18
      %21 = dma.hbm_to_vmem [thread:$0]  %s0, 16, %s19, [#allocation3]
    $region5: #{tpu_custom_call.1} parent=1 // pred_fallthru
      _
    // Predicated region
    $region6: #{tpu_custom_call.1} parent=1 // pred_check
      _
    $region7: #{tpu_custom_call.1} parent=1 // pred_check_branch
      %23 = sbr.rel (0) target = $region9
    $region8: #{tpu_custom_call.1} parent=1 // pred_region
      _
    $region9: #{tpu_custom_call.1} parent=1 // pred_fallthru
      _
    // Predicated region
    $region10: #{tpu_custom_call.1} parent=1 // pred_check
      _
    $region11: #{tpu_custom_call.1} parent=1 // pred_check_branch
      %25 = sbr.rel (0) target = $region13
    $region12: #{tpu_custom_call.1} parent=1 // pred_region
      %26 = dma.done [#allocation3], 16
    $region13: #{tpu_custom_call.1} parent=1 // pred_fallthru
      _
    %s27 = smul.u32 0, 32
    %v28 = vld [vmem:[#allocation2] sm:$0x1]
    %v29 = vld [vmem:[%s1] sm:$0x1]
    %v30 = vlaneseq
    %v31 = vshrl.u32 %v30, 7
    %v32 = vadd.s32 %v31, 8
    %v33 = vadd.s32 %v31, 16
    %v34 = vadd.s32 %v31, 24
    %v35 = vstv %s27
    %v36 = vadd.s32 %v31, %v35
    %v37 = vadd.s32 %v32, %v35
    %v38 = vadd.s32 %v33, %v35
    %v39 = vadd.s32 %v34, %v35
    %v40 = vcvt.s32.f32 %v36
    %v41 = vcvt.s32.f32 %v37
    %v42 = vcvt.s32.f32 %v38
    %v43 = vcvt.s32.f32 %v39
    %v45 = vlaneseq
    %v46 = vshrl.u32 %v45, 7
    %v47 = vsub.s32 0, %v46
    %v48 = vrot.slane %v28, %v47
    %v50 = vmul.f32 %v40, %v48
    %v51 = vmul.f32 %v41, %v48
    %v52 = vmul.f32 %v42, %v48
    %v53 = vmul.f32 %v43, %v48
    %v55 = vlaneseq
    %v56 = vshrl.u32 %v55, 7
    %v57 = vsub.s32 0, %v56
    %v58 = vrot.slane %v29, %v57
    %v60 = vadd.f32 %v50, %v58
    %v61 = vadd.f32 %v51, %v58
    %v62 = vadd.f32 %v52, %v58
    %v63 = vadd.f32 %v53, %v58
    %v64 = vand.u32 2147483647, %v60
    %vm65 = vcmp.le.f32.partialorder %v64, 0.7853982
    %vm66 = vcmp.lt.s32.totalorder %v60, 0
    %v67 = vand.u32 %v60, 2139095040
    %v68 = vshrl.u32 %v67, 23
    %v69 = vsub.s32 %v68, 127
    %v70 = vand.u32 2147483647, %v60
    %v71 = vand.u32 %v70, 8388607
    %v72 = vor.u32 %v71, 8388608
    %v73 = vsub.s32 0, %v72
    %v74 = vadd.s32 %v69, 1
    %vm75 = vcmp.gt.s32.totalorder %v74, 0
    %v76 = vsel %vm75, %v74, 0
    %v77 = vshrl.u32 %v76, 5
    %v78 = vand.u32 %v76, 31
    %v79 = vsub.s32 32, %v78
    %v80 = vshrl.u32 683565275, %v79
    %v81 = vshll.u32 683565275, %v78
    %v82 = vshrl.u32 2475754826, %v79
    %v83 = vor.u32 %v81, %v82
    %v84 = vshll.u32 2475754826, %v78
    %v85 = vshrl.u32 2131351028, %v79
    %v86 = vor.u32 %v84, %v85
    %v87 = vshll.u32 2131351028, %v78
    %v88 = vshrl.u32 2102212464, %v79
    %v89 = vor.u32 %v87, %v88
    %v90 = vshll.u32 2102212464, %v78
    %v91 = vshrl.u32 920167782, %v79
    %v92 = vor.u32 %v90, %v91
    %v93 = vshll.u32 920167782, %v78
    %v94 = vshrl.u32 1326507024, %v79
    %v95 = vor.u32 %v93, %v94
    %vm96 = vcmp.lt.s32.totalorder %v77, 1
    %vm97 = vcmp.lt.s32.totalorder %v77, 2
    %vm98 = vcmp.lt.s32.totalorder %v77, 3
    %vm99 = vcmp.lt.s32.totalorder %v77, 4
    %v100 = vsel %vm96, %v80, %v83
    %v101 = vsel %vm99, %v89, 2102212464
    %v102 = vsel %vm98, %v86, %v101
    %v103 = vsel %vm97, %v100, %v102
    %v104 = vsel %vm96, %v83, %v86
    %v105 = vsel %vm99, %v92, 920167782
    %v106 = vsel %vm98, %v89, %v105
    %v107 = vsel %vm97, %v104, %v106
    %v108 = vsel %vm96, %v86, %v89
    %v109 = vsel %vm99, %v95, 1326507024
    %v110 = vsel %vm98, %v92, %v109
    %v111 = vsel %vm97, %v108, %v110
    %v112 = vshll.u32 %v72, 8
    %v113 = vmul.u32.u64.compose %v112, %v111
    %v114 = vextract.low.u32 %v113
    %v115 = vextract.high.u32 %v113
    %v116 = vmul.u32.u64.compose %v112, %v107
    %v117 = vextract.low.u32 %v116
    %v118 = vextract.high.u32 %v116
    %v119 = vmul.u32 %v112, %v103
    %v120 = vadd.s32 %v115, %v117
    %vm121 = vc.u32 %v115, %v117
    %v122 = vadd.s32 %v118, 1
    %v123 = vsel %vm121, %v122, %v118
    %v124 = vadd.s32 %v119, %v123
    %v125 = vadd.s32 %v124, 536870912
    %v126 = vshrl.u32 %v125, 30
    %v127 = vshll.u32 %v126, 30
    %v128 = vsub.s32 %v124, %v127
    %vm129 = vcmp.lt.s32.totalorder %v128, 0
    %v130 = vsub.s32 0, %v128
    %v131 = vsel %vm129, %v130, %v128
    %v132 = vclz %v131
    %v133 = vsub.s32 %v132, 2
    %vm134 = vcmp.gt.s32.totalorder 0, %v133
    %v135 = vsel %vm134, 0, %v133
    %v136 = vsub.s32 32, %v135
    %v137 = vshll.u32 %v128, %v135
    %v138 = vshrl.u32 %v120, %v136
    %v139 = vor.u32 %v137, %v138
    %v140 = vsub.s32 4294967266, %v135
    %v141 = vadd.s32 %v140, 127
    %v142 = vshll.u32 %v141, 23
    %v143 = vor.u32 4788187, %v142
    %v144 = vand.u32 2147483647, %v143
    %v146 = vcvt.s32.f32 %v139
    %v147 = vmul.f32 %v146, %v144
    %v148 = vxor.u32 %v147, 2147483648
    %v149 = vsel %vm66, %v148, %v147
    %v150 = vsub.s32 4, %v126
    %v151 = vsel %vm66, %v150, %v126
    %v152 = vsel %vm65, %v60, %v149
    %v153 = vsel %vm65, 0, %v151
    %v154 = vcosq.f32.pop %v152
    %v155 = vsinq.f32.pop %v152
    %vm156 = vweird.f32 %v60
    %v157 = vand.u32 %v153, 3
    %vm158 = vcmp.lt.s32.totalorder %v157, 2
    %vm159 = vcmp.eq.s32.totalorder %v157, 0
    %v160 = vxor.u32 %v155, 2147483648
    %v161 = vsel %vm159, %v154, %v160
    %vm162 = vcmp.eq.s32.totalorder %v157, 2
    %v163 = vxor.u32 %v154, 2147483648
    %v164 = vsel %vm162, %v163, %v155
    %v165 = vsel %vm158, %v161, %v164
    %v166 = vsel %vm156, nan, %v165
    %v167 = vand.u32 2147483647, %v61
    %vm168 = vcmp.le.f32.partialorder %v167, 0.7853982
    %vm169 = vcmp.lt.s32.totalorder %v61, 0
    %v170 = vand.u32 %v61, 2139095040
    %v171 = vshrl.u32 %v170, 23
    %v172 = vsub.s32 %v171, 127
    %v173 = vand.u32 2147483647, %v61
    %v174 = vand.u32 %v173, 8388607
    %v175 = vor.u32 %v174, 8388608
    %v176 = vsub.s32 0, %v175
    %v177 = vadd.s32 %v172, 1
    %vm178 = vcmp.gt.s32.totalorder %v177, 0
    %v179 = vsel %vm178, %v177, 0
    %v180 = vshrl.u32 %v179, 5
    %v181 = vand.u32 %v179, 31
    %v182 = vsub.s32 32, %v181
    %v183 = vshrl.u32 683565275, %v182
    %v184 = vshll.u32 683565275, %v181
    %v185 = vshrl.u32 2475754826, %v182
    %v186 = vor.u32 %v184, %v185
    %v187 = vshll.u32 2475754826, %v181
    %v188 = vshrl.u32 2131351028, %v182
    %v189 = vor.u32 %v187, %v188
    %v190 = vshll.u32 2131351028, %v181
    %v191 = vshrl.u32 2102212464, %v182
    %v192 = vor.u32 %v190, %v191
    %v193 = vshll.u32 2102212464, %v181
    %v194 = vshrl.u32 920167782, %v182
    %v195 = vor.u32 %v193, %v194
    %v196 = vshll.u32 920167782, %v181
    %v197 = vshrl.u32 1326507024, %v182
    %v198 = vor.u32 %v196, %v197
    %vm199 = vcmp.lt.s32.totalorder %v180, 1
    %vm200 = vcmp.lt.s32.totalorder %v180, 2
    %vm201 = vcmp.lt.s32.totalorder %v180, 3
    %vm202 = vcmp.lt.s32.totalorder %v180, 4
    %v203 = vsel %vm199, %v183, %v186
    %v204 = vsel %vm202, %v192, 2102212464
    %v205 = vsel %vm201, %v189, %v204
    %v206 = vsel %vm200, %v203, %v205
    %v207 = vsel %vm199, %v186, %v189
    %v208 = vsel %vm202, %v195, 920167782
    %v209 = vsel %vm201, %v192, %v208
    %v210 = vsel %vm200, %v207, %v209
    %v211 = vsel %vm199, %v189, %v192
    %v212 = vsel %vm202, %v198, 1326507024
    %v213 = vsel %vm201, %v195, %v212
    %v214 = vsel %vm200, %v211, %v213
    %v215 = vshll.u32 %v175, 8
    %v216 = vmul.u32.u64.compose %v215, %v214
    %v217 = vextract.low.u32 %v216
    %v218 = vextract.high.u32 %v216
    %v219 = vmul.u32.u64.compose %v215, %v210
    %v220 = vextract.low.u32 %v219
    %v221 = vextract.high.u32 %v219
    %v222 = vmul.u32 %v215, %v206
    %v223 = vadd.s32 %v218, %v220
    %vm224 = vc.u32 %v218, %v220
    %v225 = vadd.s32 %v221, 1
    %v226 = vsel %vm224, %v225, %v221
    %v227 = vadd.s32 %v222, %v226
    %v228 = vadd.s32 %v227, 536870912
    %v229 = vshrl.u32 %v228, 30
    %v230 = vshll.u32 %v229, 30
    %v231 = vsub.s32 %v227, %v230
    %vm232 = vcmp.lt.s32.totalorder %v231, 0
    %v233 = vsub.s32 0, %v231
    %v234 = vsel %vm232, %v233, %v231
    %v235 = vclz %v234
    %v236 = vsub.s32 %v235, 2
    %vm237 = vcmp.gt.s32.totalorder 0, %v236
    %v238 = vsel %vm237, 0, %v236
    %v239 = vsub.s32 32, %v238
    %v240 = vshll.u32 %v231, %v238
    %v241 = vshrl.u32 %v223, %v239
    %v242 = vor.u32 %v240, %v241
    %v243 = vsub.s32 4294967266, %v238
    %v244 = vadd.s32 %v243, 127
    %v245 = vshll.u32 %v244, 23
    %v246 = vor.u32 4788187, %v245
    %v247 = vand.u32 2147483647, %v246
    %v249 = vcvt.s32.f32 %v242
    %v250 = vmul.f32 %v249, %v247
    %v251 = vxor.u32 %v250, 2147483648
    %v252 = vsel %vm169, %v251, %v250
    %v253 = vsub.s32 4, %v229
    %v254 = vsel %vm169, %v253, %v229
    %v255 = vsel %vm168, %v61, %v252
    %v256 = vsel %vm168, 0, %v254
    %v257 = vcosq.f32.pop %v255
    %v258 = vsinq.f32.pop %v255
    %vm259 = vweird.f32 %v61
    %v260 = vand.u32 %v256, 3
    %vm261 = vcmp.lt.s32.totalorder %v260, 2
    %vm262 = vcmp.eq.s32.totalorder %v260, 0
    %v263 = vxor.u32 %v258, 2147483648
    %v264 = vsel %vm262, %v257, %v263
    %vm265 = vcmp.eq.s32.totalorder %v260, 2
    %v266 = vxor.u32 %v257, 2147483648
    %v267 = vsel %vm265, %v266, %v258
    %v268 = vsel %vm261, %v264, %v267
    %v269 = vsel %vm259, nan, %v268
    %v270 = vand.u32 2147483647, %v62
    %vm271 = vcmp.le.f32.partialorder %v270, 0.7853982
    %vm272 = vcmp.lt.s32.totalorder %v62, 0
    %v273 = vand.u32 %v62, 2139095040
    %v274 = vshrl.u32 %v273, 23
    %v275 = vsub.s32 %v274, 127
    %v276 = vand.u32 2147483647, %v62
    %v277 = vand.u32 %v276, 8388607
    %v278 = vor.u32 %v277, 8388608
    %v279 = vsub.s32 0, %v278
    %v280 = vadd.s32 %v275, 1
    %vm281 = vcmp.gt.s32.totalorder %v280, 0
    %v282 = vsel %vm281, %v280, 0
    %v283 = vshrl.u32 %v282, 5
    %v284 = vand.u32 %v282, 31
    %v285 = vsub.s32 32, %v284
    %v286 = vshrl.u32 683565275, %v285
    %v287 = vshll.u32 683565275, %v284
    %v288 = vshrl.u32 2475754826, %v285
    %v289 = vor.u32 %v287, %v288
    %v290 = vshll.u32 2475754826, %v284
    %v291 = vshrl.u32 2131351028, %v285
    %v292 = vor.u32 %v290, %v291
    %v293 = vshll.u32 2131351028, %v284
    %v294 = vshrl.u32 2102212464, %v285
    %v295 = vor.u32 %v293, %v294
    %v296 = vshll.u32 2102212464, %v284
    %v297 = vshrl.u32 920167782, %v285
    %v298 = vor.u32 %v296, %v297
    %v299 = vshll.u32 920167782, %v284
    %v300 = vshrl.u32 1326507024, %v285
    %v301 = vor.u32 %v299, %v300
    %vm302 = vcmp.lt.s32.totalorder %v283, 1
    %vm303 = vcmp.lt.s32.totalorder %v283, 2
    %vm304 = vcmp.lt.s32.totalorder %v283, 3
    %vm305 = vcmp.lt.s32.totalorder %v283, 4
    %v306 = vsel %vm302, %v286, %v289
    %v307 = vsel %vm305, %v295, 2102212464
    %v308 = vsel %vm304, %v292, %v307
    %v309 = vsel %vm303, %v306, %v308
    %v310 = vsel %vm302, %v289, %v292
    %v311 = vsel %vm305, %v298, 920167782
    %v312 = vsel %vm304, %v295, %v311
    %v313 = vsel %vm303, %v310, %v312
    %v314 = vsel %vm302, %v292, %v295
    %v315 = vsel %vm305, %v301, 1326507024
    %v316 = vsel %vm304, %v298, %v315
    %v317 = vsel %vm303, %v314, %v316
    %v318 = vshll.u32 %v278, 8
    %v319 = vmul.u32.u64.compose %v318, %v317
    %v320 = vextract.low.u32 %v319
    %v321 = vextract.high.u32 %v319
    %v322 = vmul.u32.u64.compose %v318, %v313
    %v323 = vextract.low.u32 %v322
    %v324 = vextract.high.u32 %v322
    %v325 = vmul.u32 %v318, %v309
    %v326 = vadd.s32 %v321, %v323
    %vm327 = vc.u32 %v321, %v323
    %v328 = vadd.s32 %v324, 1
    %v329 = vsel %vm327, %v328, %v324
    %v330 = vadd.s32 %v325, %v329
    %v331 = vadd.s32 %v330, 536870912
    %v332 = vshrl.u32 %v331, 30
    %v333 = vshll.u32 %v332, 30
    %v334 = vsub.s32 %v330, %v333
    %vm335 = vcmp.lt.s32.totalorder %v334, 0
    %v336 = vsub.s32 0, %v334
    %v337 = vsel %vm335, %v336, %v334
    %v338 = vclz %v337
    %v339 = vsub.s32 %v338, 2
    %vm340 = vcmp.gt.s32.totalorder 0, %v339
    %v341 = vsel %vm340, 0, %v339
    %v342 = vsub.s32 32, %v341
    %v343 = vshll.u32 %v334, %v341
    %v344 = vshrl.u32 %v326, %v342
    %v345 = vor.u32 %v343, %v344
    %v346 = vsub.s32 4294967266, %v341
    %v347 = vadd.s32 %v346, 127
    %v348 = vshll.u32 %v347, 23
    %v349 = vor.u32 4788187, %v348
    %v350 = vand.u32 2147483647, %v349
    %v352 = vcvt.s32.f32 %v345
    %v353 = vmul.f32 %v352, %v350
    %v354 = vxor.u32 %v353, 2147483648
    %v355 = vsel %vm272, %v354, %v353
    %v356 = vsub.s32 4, %v332
    %v357 = vsel %vm272, %v356, %v332
    %v358 = vsel %vm271, %v62, %v355
    %v359 = vsel %vm271, 0, %v357
    %v360 = vcosq.f32.pop %v358
    %v361 = vsinq.f32.pop %v358
    %vm362 = vweird.f32 %v62
    %v363 = vand.u32 %v359, 3
    %vm364 = vcmp.lt.s32.totalorder %v363, 2
    %vm365 = vcmp.eq.s32.totalorder %v363, 0
    %v366 = vxor.u32 %v361, 2147483648
    %v367 = vsel %vm365, %v360, %v366
    %vm368 = vcmp.eq.s32.totalorder %v363, 2
    %v369 = vxor.u32 %v360, 2147483648
    %v370 = vsel %vm368, %v369, %v361
    %v371 = vsel %vm364, %v367, %v370
    %v372 = vsel %vm362, nan, %v371
    %v373 = vand.u32 2147483647, %v63
    %vm374 = vcmp.le.f32.partialorder %v373, 0.7853982
    %vm375 = vcmp.lt.s32.totalorder %v63, 0
    %v376 = vand.u32 %v63, 2139095040
    %v377 = vshrl.u32 %v376, 23
    %v378 = vsub.s32 %v377, 127
    %v379 = vand.u32 2147483647, %v63
    %v380 = vand.u32 %v379, 8388607
    %v381 = vor.u32 %v380, 8388608
    %v382 = vsub.s32 0, %v381
    %v383 = vadd.s32 %v378, 1
    %vm384 = vcmp.gt.s32.totalorder %v383, 0
    %v385 = vsel %vm384, %v383, 0
    %v386 = vshrl.u32 %v385, 5
    %v387 = vand.u32 %v385, 31
    %v388 = vsub.s32 32, %v387
    %v389 = vshrl.u32 683565275, %v388
    %v390 = vshll.u32 683565275, %v387
    %v391 = vshrl.u32 2475754826, %v388
    %v392 = vor.u32 %v390, %v391
    %v393 = vshll.u32 2475754826, %v387
    %v394 = vshrl.u32 2131351028, %v388
    %v395 = vor.u32 %v393, %v394
    %v396 = vshll.u32 2131351028, %v387
    %v397 = vshrl.u32 2102212464, %v388
    %v398 = vor.u32 %v396, %v397
    %v399 = vshll.u32 2102212464, %v387
    %v400 = vshrl.u32 920167782, %v388
    %v401 = vor.u32 %v399, %v400
    %v402 = vshll.u32 920167782, %v387
    %v403 = vshrl.u32 1326507024, %v388
    %v404 = vor.u32 %v402, %v403
    %vm405 = vcmp.lt.s32.totalorder %v386, 1
    %vm406 = vcmp.lt.s32.totalorder %v386, 2
    %vm407 = vcmp.lt.s32.totalorder %v386, 3
    %vm408 = vcmp.lt.s32.totalorder %v386, 4
    %v409 = vsel %vm405, %v389, %v392
    %v410 = vsel %vm408, %v398, 2102212464
    %v411 = vsel %vm407, %v395, %v410
    %v412 = vsel %vm406, %v409, %v411
    %v413 = vsel %vm405, %v392, %v395
    %v414 = vsel %vm408, %v401, 920167782
    %v415 = vsel %vm407, %v398, %v414
    %v416 = vsel %vm406, %v413, %v415
    %v417 = vsel %vm405, %v395, %v398
    %v418 = vsel %vm408, %v404, 1326507024
    %v419 = vsel %vm407, %v401, %v418
    %v420 = vsel %vm406, %v417, %v419
    %v421 = vshll.u32 %v381, 8
    %v422 = vmul.u32.u64.compose %v421, %v420
    %v423 = vextract.low.u32 %v422
    %v424 = vextract.high.u32 %v422
    %v425 = vmul.u32.u64.compose %v421, %v416
    %v426 = vextract.low.u32 %v425
    %v427 = vextract.high.u32 %v425
    %v428 = vmul.u32 %v421, %v412
    %v429 = vadd.s32 %v424, %v426
    %vm430 = vc.u32 %v424, %v426
    %v431 = vadd.s32 %v427, 1
    %v432 = vsel %vm430, %v431, %v427
    %v433 = vadd.s32 %v428, %v432
    %v434 = vadd.s32 %v433, 536870912
    %v435 = vshrl.u32 %v434, 30
    %v436 = vshll.u32 %v435, 30
    %v437 = vsub.s32 %v433, %v436
    %vm438 = vcmp.lt.s32.totalorder %v437, 0
    %v439 = vsub.s32 0, %v437
    %v440 = vsel %vm438, %v439, %v437
    %v441 = vclz %v440
    %v442 = vsub.s32 %v441, 2
    %vm443 = vcmp.gt.s32.totalorder 0, %v442
    %v444 = vsel %vm443, 0, %v442
    %v445 = vsub.s32 32, %v444
    %v446 = vshll.u32 %v437, %v444
    %v447 = vshrl.u32 %v429, %v445
    %v448 = vor.u32 %v446, %v447
    %v449 = vsub.s32 4294967266, %v444
    %v450 = vadd.s32 %v449, 127
    %v451 = vshll.u32 %v450, 23
    %v452 = vor.u32 4788187, %v451
    %v453 = vand.u32 2147483647, %v452
    %v455 = vcvt.s32.f32 %v448
    %v456 = vmul.f32 %v455, %v453
    %v457 = vxor.u32 %v456, 2147483648
    %v458 = vsel %vm375, %v457, %v456
    %v459 = vsub.s32 4, %v435
    %v460 = vsel %vm375, %v459, %v435
    %v461 = vsel %vm374, %v63, %v458
    %v462 = vsel %vm374, 0, %v460
    %v463 = vcosq.f32.pop %v461
    %v464 = vsinq.f32.pop %v461
    %vm465 = vweird.f32 %v63
    %v466 = vand.u32 %v462, 3
    %vm467 = vcmp.lt.s32.totalorder %v466, 2
    %vm468 = vcmp.eq.s32.totalorder %v466, 0
    %v469 = vxor.u32 %v464, 2147483648
    %v470 = vsel %vm468, %v463, %v469
    %vm471 = vcmp.eq.s32.totalorder %v466, 2
    %v472 = vxor.u32 %v463, 2147483648
    %v473 = vsel %vm471, %v472, %v464
    %v474 = vsel %vm467, %v470, %v473
    %v475 = vsel %vm465, nan, %v474
    %476 = vst [vmem:[#allocation5] sm:$0xff] %v166
    %477 = vst [vmem:[#allocation5 + $0x8] sm:$0xff] %v269
    %478 = vst [vmem:[#allocation5 + $0x10] sm:$0xff] %v372
    %479 = vst [vmem:[#allocation5 + $0x18] sm:$0xff] %v475
    %v480 = vand.u32 2147483647, %v60
    %vm481 = vcmp.le.f32.partialorder %v480, 0.7853982
    %vm482 = vcmp.lt.s32.totalorder %v60, 0
    %v483 = vand.u32 %v60, 2139095040
    %v484 = vshrl.u32 %v483, 23
    %v485 = vsub.s32 %v484, 127
    %v486 = vand.u32 2147483647, %v60
    %v487 = vand.u32 %v486, 8388607
    %v488 = vor.u32 %v487, 8388608
    %v489 = vsub.s32 0, %v488
    %v490 = vadd.s32 %v485, 1
    %vm491 = vcmp.gt.s32.totalorder %v490, 0
    %v492 = vsel %vm491, %v490, 0
    %v493 = vshrl.u32 %v492, 5
    %v494 = vand.u32 %v492, 31
    %v495 = vsub.s32 32, %v494
    %v496 = vshrl.u32 683565275, %v495
    %v497 = vshll.u32 683565275, %v494
    %v498 = vshrl.u32 2475754826, %v495
    %v499 = vor.u32 %v497, %v498
    %v500 = vshll.u32 2475754826, %v494
    %v501 = vshrl.u32 2131351028, %v495
    %v502 = vor.u32 %v500, %v501
    %v503 = vshll.u32 2131351028, %v494
    %v504 = vshrl.u32 2102212464, %v495
    %v505 = vor.u32 %v503, %v504
    %v506 = vshll.u32 2102212464, %v494
    %v507 = vshrl.u32 920167782, %v495
    %v508 = vor.u32 %v506, %v507
    %v509 = vshll.u32 920167782, %v494
    %v510 = vshrl.u32 1326507024, %v495
    %v511 = vor.u32 %v509, %v510
    %vm512 = vcmp.lt.s32.totalorder %v493, 1
    %vm513 = vcmp.lt.s32.totalorder %v493, 2
    %vm514 = vcmp.lt.s32.totalorder %v493, 3
    %vm515 = vcmp.lt.s32.totalorder %v493, 4
    %v516 = vsel %vm512, %v496, %v499
    %v517 = vsel %vm515, %v505, 2102212464
    %v518 = vsel %vm514, %v502, %v517
    %v519 = vsel %vm513, %v516, %v518
    %v520 = vsel %vm512, %v499, %v502
    %v521 = vsel %vm515, %v508, 920167782
    %v522 = vsel %vm514, %v505, %v521
    %v523 = vsel %vm513, %v520, %v522
    %v524 = vsel %vm512, %v502, %v505
    %v525 = vsel %vm515, %v511, 1326507024
    %v526 = vsel %vm514, %v508, %v525
    %v527 = vsel %vm513, %v524, %v526
    %v528 = vshll.u32 %v488, 8
    %v529 = vmul.u32.u64.compose %v528, %v527
    %v530 = vextract.low.u32 %v529
    %v531 = vextract.high.u32 %v529
    %v532 = vmul.u32.u64.compose %v528, %v523
    %v533 = vextract.low.u32 %v532
    %v534 = vextract.high.u32 %v532
    %v535 = vmul.u32 %v528, %v519
    %v536 = vadd.s32 %v531, %v533
    %vm537 = vc.u32 %v531, %v533
    %v538 = vadd.s32 %v534, 1
    %v539 = vsel %vm537, %v538, %v534
    %v540 = vadd.s32 %v535, %v539
    %v541 = vadd.s32 %v540, 536870912
    %v542 = vshrl.u32 %v541, 30
    %v543 = vshll.u32 %v542, 30
    %v544 = vsub.s32 %v540, %v543
    %vm545 = vcmp.lt.s32.totalorder %v544, 0
    %v546 = vsub.s32 0, %v544
    %v547 = vsel %vm545, %v546, %v544
    %v548 = vclz %v547
    %v549 = vsub.s32 %v548, 2
    %vm550 = vcmp.gt.s32.totalorder 0, %v549
    %v551 = vsel %vm550, 0, %v549
    %v552 = vsub.s32 32, %v551
    %v553 = vshll.u32 %v544, %v551
    %v554 = vshrl.u32 %v536, %v552
    %v555 = vor.u32 %v553, %v554
    %v556 = vsub.s32 4294967266, %v551
    %v557 = vadd.s32 %v556, 127
    %v558 = vshll.u32 %v557, 23
    %v559 = vor.u32 4788187, %v558
    %v560 = vand.u32 2147483647, %v559
    %v562 = vcvt.s32.f32 %v555
    %v563 = vmul.f32 %v562, %v560
    %v564 = vxor.u32 %v563, 2147483648
    %v565 = vsel %vm482, %v564, %v563
    %v566 = vsub.s32 4, %v542
    %v567 = vsel %vm482, %v566, %v542
    %v568 = vsel %vm481, %v60, %v565
    %v569 = vsel %vm481, 0, %v567
    %v570 = vcosq.f32.pop %v568
    %v571 = vsinq.f32.pop %v568
    %vm572 = vweird.f32 %v60
    %v573 = vadd.s32 %v569, 3
    %v574 = vand.u32 %v573, 3
    %vm575 = vcmp.lt.s32.totalorder %v574, 2
    %vm576 = vcmp.eq.s32.totalorder %v574, 0
    %v577 = vxor.u32 %v571, 2147483648
    %v578 = vsel %vm576, %v570, %v577
    %vm579 = vcmp.eq.s32.totalorder %v574, 2
    %v580 = vxor.u32 %v570, 2147483648
    %v581 = vsel %vm579, %v580, %v571
    %v582 = vsel %vm575, %v578, %v581
    %v583 = vsel %vm572, nan, %v582
    %v584 = vand.u32 2147483647, %v61
    %vm585 = vcmp.le.f32.partialorder %v584, 0.7853982
    %vm586 = vcmp.lt.s32.totalorder %v61, 0
    %v587 = vand.u32 %v61, 2139095040
    %v588 = vshrl.u32 %v587, 23
    %v589 = vsub.s32 %v588, 127
    %v590 = vand.u32 2147483647, %v61
    %v591 = vand.u32 %v590, 8388607
    %v592 = vor.u32 %v591, 8388608
    %v593 = vsub.s32 0, %v592
    %v594 = vadd.s32 %v589, 1
    %vm595 = vcmp.gt.s32.totalorder %v594, 0
    %v596 = vsel %vm595, %v594, 0
    %v597 = vshrl.u32 %v596, 5
    %v598 = vand.u32 %v596, 31
    %v599 = vsub.s32 32, %v598
    %v600 = vshrl.u32 683565275, %v599
    %v601 = vshll.u32 683565275, %v598
    %v602 = vshrl.u32 2475754826, %v599
    %v603 = vor.u32 %v601, %v602
    %v604 = vshll.u32 2475754826, %v598
    %v605 = vshrl.u32 2131351028, %v599
    %v606 = vor.u32 %v604, %v605
    %v607 = vshll.u32 2131351028, %v598
    %v608 = vshrl.u32 2102212464, %v599
    %v609 = vor.u32 %v607, %v608
    %v610 = vshll.u32 2102212464, %v598
    %v611 = vshrl.u32 920167782, %v599
    %v612 = vor.u32 %v610, %v611
    %v613 = vshll.u32 920167782, %v598
    %v614 = vshrl.u32 1326507024, %v599
    %v615 = vor.u32 %v613, %v614
    %vm616 = vcmp.lt.s32.totalorder %v597, 1
    %vm617 = vcmp.lt.s32.totalorder %v597, 2
    %vm618 = vcmp.lt.s32.totalorder %v597, 3
    %vm619 = vcmp.lt.s32.totalorder %v597, 4
    %v620 = vsel %vm616, %v600, %v603
    %v621 = vsel %vm619, %v609, 2102212464
    %v622 = vsel %vm618, %v606, %v621
    %v623 = vsel %vm617, %v620, %v622
    %v624 = vsel %vm616, %v603, %v606
    %v625 = vsel %vm619, %v612, 920167782
    %v626 = vsel %vm618, %v609, %v625
    %v627 = vsel %vm617, %v624, %v626
    %v628 = vsel %vm616, %v606, %v609
    %v629 = vsel %vm619, %v615, 1326507024
    %v630 = vsel %vm618, %v612, %v629
    %v631 = vsel %vm617, %v628, %v630
    %v632 = vshll.u32 %v592, 8
    %v633 = vmul.u32.u64.compose %v632, %v631
    %v634 = vextract.low.u32 %v633
    %v635 = vextract.high.u32 %v633
    %v636 = vmul.u32.u64.compose %v632, %v627
    %v637 = vextract.low.u32 %v636
    %v638 = vextract.high.u32 %v636
    %v639 = vmul.u32 %v632, %v623
    %v640 = vadd.s32 %v635, %v637
    %vm641 = vc.u32 %v635, %v637
    %v642 = vadd.s32 %v638, 1
    %v643 = vsel %vm641, %v642, %v638
    %v644 = vadd.s32 %v639, %v643
    %v645 = vadd.s32 %v644, 536870912
    %v646 = vshrl.u32 %v645, 30
    %v647 = vshll.u32 %v646, 30
    %v648 = vsub.s32 %v644, %v647
    %vm649 = vcmp.lt.s32.totalorder %v648, 0
    %v650 = vsub.s32 0, %v648
    %v651 = vsel %vm649, %v650, %v648
    %v652 = vclz %v651
    %v653 = vsub.s32 %v652, 2
    %vm654 = vcmp.gt.s32.totalorder 0, %v653
    %v655 = vsel %vm654, 0, %v653
    %v656 = vsub.s32 32, %v655
    %v657 = vshll.u32 %v648, %v655
    %v658 = vshrl.u32 %v640, %v656
    %v659 = vor.u32 %v657, %v658
    %v660 = vsub.s32 4294967266, %v655
    %v661 = vadd.s32 %v660, 127
    %v662 = vshll.u32 %v661, 23
    %v663 = vor.u32 4788187, %v662
    %v664 = vand.u32 2147483647, %v663
    %v666 = vcvt.s32.f32 %v659
    %v667 = vmul.f32 %v666, %v664
    %v668 = vxor.u32 %v667, 2147483648
    %v669 = vsel %vm586, %v668, %v667
    %v670 = vsub.s32 4, %v646
    %v671 = vsel %vm586, %v670, %v646
    %v672 = vsel %vm585, %v61, %v669
    %v673 = vsel %vm585, 0, %v671
    %v674 = vcosq.f32.pop %v672
    %v675 = vsinq.f32.pop %v672
    %vm676 = vweird.f32 %v61
    %v677 = vadd.s32 %v673, 3
    %v678 = vand.u32 %v677, 3
    %vm679 = vcmp.lt.s32.totalorder %v678, 2
    %vm680 = vcmp.eq.s32.totalorder %v678, 0
    %v681 = vxor.u32 %v675, 2147483648
    %v682 = vsel %vm680, %v674, %v681
    %vm683 = vcmp.eq.s32.totalorder %v678, 2
    %v684 = vxor.u32 %v674, 2147483648
    %v685 = vsel %vm683, %v684, %v675
    %v686 = vsel %vm679, %v682, %v685
    %v687 = vsel %vm676, nan, %v686
    %v688 = vand.u32 2147483647, %v62
    %vm689 = vcmp.le.f32.partialorder %v688, 0.7853982
    %vm690 = vcmp.lt.s32.totalorder %v62, 0
    %v691 = vand.u32 %v62, 2139095040
    %v692 = vshrl.u32 %v691, 23
    %v693 = vsub.s32 %v692, 127
    %v694 = vand.u32 2147483647, %v62
    %v695 = vand.u32 %v694, 8388607
    %v696 = vor.u32 %v695, 8388608
    %v697 = vsub.s32 0, %v696
    %v698 = vadd.s32 %v693, 1
    %vm699 = vcmp.gt.s32.totalorder %v698, 0
    %v700 = vsel %vm699, %v698, 0
    %v701 = vshrl.u32 %v700, 5
    %v702 = vand.u32 %v700, 31
    %v703 = vsub.s32 32, %v702
    %v704 = vshrl.u32 683565275, %v703
    %v705 = vshll.u32 683565275, %v702
    %v706 = vshrl.u32 2475754826, %v703
    %v707 = vor.u32 %v705, %v706
    %v708 = vshll.u32 2475754826, %v702
    %v709 = vshrl.u32 2131351028, %v703
    %v710 = vor.u32 %v708, %v709
    %v711 = vshll.u32 2131351028, %v702
    %v712 = vshrl.u32 2102212464, %v703
    %v713 = vor.u32 %v711, %v712
    %v714 = vshll.u32 2102212464, %v702
    %v715 = vshrl.u32 920167782, %v703
    %v716 = vor.u32 %v714, %v715
    %v717 = vshll.u32 920167782, %v702
    %v718 = vshrl.u32 1326507024, %v703
    %v719 = vor.u32 %v717, %v718
    %vm720 = vcmp.lt.s32.totalorder %v701, 1
    %vm721 = vcmp.lt.s32.totalorder %v701, 2
    %vm722 = vcmp.lt.s32.totalorder %v701, 3
    %vm723 = vcmp.lt.s32.totalorder %v701, 4
    %v724 = vsel %vm720, %v704, %v707
    %v725 = vsel %vm723, %v713, 2102212464
    %v726 = vsel %vm722, %v710, %v725
    %v727 = vsel %vm721, %v724, %v726
    %v728 = vsel %vm720, %v707, %v710
    %v729 = vsel %vm723, %v716, 920167782
    %v730 = vsel %vm722, %v713, %v729
    %v731 = vsel %vm721, %v728, %v730
    %v732 = vsel %vm720, %v710, %v713
    %v733 = vsel %vm723, %v719, 1326507024
    %v734 = vsel %vm722, %v716, %v733
    %v735 = vsel %vm721, %v732, %v734
    %v736 = vshll.u32 %v696, 8
    %v737 = vmul.u32.u64.compose %v736, %v735
    %v738 = vextract.low.u32 %v737
    %v739 = vextract.high.u32 %v737
    %v740 = vmul.u32.u64.compose %v736, %v731
    %v741 = vextract.low.u32 %v740
    %v742 = vextract.high.u32 %v740
    %v743 = vmul.u32 %v736, %v727
    %v744 = vadd.s32 %v739, %v741
    %vm745 = vc.u32 %v739, %v741
    %v746 = vadd.s32 %v742, 1
    %v747 = vsel %vm745, %v746, %v742
    %v748 = vadd.s32 %v743, %v747
    %v749 = vadd.s32 %v748, 536870912
    %v750 = vshrl.u32 %v749, 30
    %v751 = vshll.u32 %v750, 30
    %v752 = vsub.s32 %v748, %v751
    %vm753 = vcmp.lt.s32.totalorder %v752, 0
    %v754 = vsub.s32 0, %v752
    %v755 = vsel %vm753, %v754, %v752
    %v756 = vclz %v755
    %v757 = vsub.s32 %v756, 2
    %vm758 = vcmp.gt.s32.totalorder 0, %v757
    %v759 = vsel %vm758, 0, %v757
    %v760 = vsub.s32 32, %v759
    %v761 = vshll.u32 %v752, %v759
    %v762 = vshrl.u32 %v744, %v760
    %v763 = vor.u32 %v761, %v762
    %v764 = vsub.s32 4294967266, %v759
    %v765 = vadd.s32 %v764, 127
    %v766 = vshll.u32 %v765, 23
    %v767 = vor.u32 4788187, %v766
    %v768 = vand.u32 2147483647, %v767
    %v770 = vcvt.s32.f32 %v763
    %v771 = vmul.f32 %v770, %v768
    %v772 = vxor.u32 %v771, 2147483648
    %v773 = vsel %vm690, %v772, %v771
    %v774 = vsub.s32 4, %v750
    %v775 = vsel %vm690, %v774, %v750
    %v776 = vsel %vm689, %v62, %v773
    %v777 = vsel %vm689, 0, %v775
    %v778 = vcosq.f32.pop %v776
    %v779 = vsinq.f32.pop %v776
    %vm780 = vweird.f32 %v62
    %v781 = vadd.s32 %v777, 3
    %v782 = vand.u32 %v781, 3
    %vm783 = vcmp.lt.s32.totalorder %v782, 2
    %vm784 = vcmp.eq.s32.totalorder %v782, 0
    %v785 = vxor.u32 %v779, 2147483648
    %v786 = vsel %vm784, %v778, %v785
    %vm787 = vcmp.eq.s32.totalorder %v782, 2
    %v788 = vxor.u32 %v778, 2147483648
    %v789 = vsel %vm787, %v788, %v779
    %v790 = vsel %vm783, %v786, %v789
    %v791 = vsel %vm780, nan, %v790
    %v792 = vand.u32 2147483647, %v63
    %vm793 = vcmp.le.f32.partialorder %v792, 0.7853982
    %vm794 = vcmp.lt.s32.totalorder %v63, 0
    %v795 = vand.u32 %v63, 2139095040
    %v796 = vshrl.u32 %v795, 23
    %v797 = vsub.s32 %v796, 127
    %v798 = vand.u32 2147483647, %v63
    %v799 = vand.u32 %v798, 8388607
    %v800 = vor.u32 %v799, 8388608
    %v801 = vsub.s32 0, %v800
    %v802 = vadd.s32 %v797, 1
    %vm803 = vcmp.gt.s32.totalorder %v802, 0
    %v804 = vsel %vm803, %v802, 0
    %v805 = vshrl.u32 %v804, 5
    %v806 = vand.u32 %v804, 31
    %v807 = vsub.s32 32, %v806
    %v808 = vshrl.u32 683565275, %v807
    %v809 = vshll.u32 683565275, %v806
    %v810 = vshrl.u32 2475754826, %v807
    %v811 = vor.u32 %v809, %v810
    %v812 = vshll.u32 2475754826, %v806
    %v813 = vshrl.u32 2131351028, %v807
    %v814 = vor.u32 %v812, %v813
    %v815 = vshll.u32 2131351028, %v806
    %v816 = vshrl.u32 2102212464, %v807
    %v817 = vor.u32 %v815, %v816
    %v818 = vshll.u32 2102212464, %v806
    %v819 = vshrl.u32 920167782, %v807
    %v820 = vor.u32 %v818, %v819
    %v821 = vshll.u32 920167782, %v806
    %v822 = vshrl.u32 1326507024, %v807
    %v823 = vor.u32 %v821, %v822
    %vm824 = vcmp.lt.s32.totalorder %v805, 1
    %vm825 = vcmp.lt.s32.totalorder %v805, 2
    %vm826 = vcmp.lt.s32.totalorder %v805, 3
    %vm827 = vcmp.lt.s32.totalorder %v805, 4
    %v828 = vsel %vm824, %v808, %v811
    %v829 = vsel %vm827, %v817, 2102212464
    %v830 = vsel %vm826, %v814, %v829
    %v831 = vsel %vm825, %v828, %v830
    %v832 = vsel %vm824, %v811, %v814
    %v833 = vsel %vm827, %v820, 920167782
    %v834 = vsel %vm826, %v817, %v833
    %v835 = vsel %vm825, %v832, %v834
    %v836 = vsel %vm824, %v814, %v817
    %v837 = vsel %vm827, %v823, 1326507024
    %v838 = vsel %vm826, %v820, %v837
    %v839 = vsel %vm825, %v836, %v838
    %v840 = vshll.u32 %v800, 8
    %v841 = vmul.u32.u64.compose %v840, %v839
    %v842 = vextract.low.u32 %v841
    %v843 = vextract.high.u32 %v841
    %v844 = vmul.u32.u64.compose %v840, %v835
    %v845 = vextract.low.u32 %v844
    %v846 = vextract.high.u32 %v844
    %v847 = vmul.u32 %v840, %v831
    %v848 = vadd.s32 %v843, %v845
    %vm849 = vc.u32 %v843, %v845
    %v850 = vadd.s32 %v846, 1
    %v851 = vsel %vm849, %v850, %v846
    %v852 = vadd.s32 %v847, %v851
    %v853 = vadd.s32 %v852, 536870912
    %v854 = vshrl.u32 %v853, 30
    %v855 = vshll.u32 %v854, 30
    %v856 = vsub.s32 %v852, %v855
    %vm857 = vcmp.lt.s32.totalorder %v856, 0
    %v858 = vsub.s32 0, %v856
    %v859 = vsel %vm857, %v858, %v856
    %v860 = vclz %v859
    %v861 = vsub.s32 %v860, 2
    %vm862 = vcmp.gt.s32.totalorder 0, %v861
    %v863 = vsel %vm862, 0, %v861
    %v864 = vsub.s32 32, %v863
    %v865 = vshll.u32 %v856, %v863
    %v866 = vshrl.u32 %v848, %v864
    %v867 = vor.u32 %v865, %v866
    %v868 = vsub.s32 4294967266, %v863
    %v869 = vadd.s32 %v868, 127
    %v870 = vshll.u32 %v869, 23
    %v871 = vor.u32 4788187, %v870
    %v872 = vand.u32 2147483647, %v871
    %v874 = vcvt.s32.f32 %v867
    %v875 = vmul.f32 %v874, %v872
    %v876 = vxor.u32 %v875, 2147483648
    %v877 = vsel %vm794, %v876, %v875
    %v878 = vsub.s32 4, %v854
    %v879 = vsel %vm794, %v878, %v854
    %v880 = vsel %vm793, %v63, %v877
    %v881 = vsel %vm793, 0, %v879
    %v882 = vcosq.f32.pop %v880
    %v883 = vsinq.f32.pop %v880
    %vm884 = vweird.f32 %v63
    %v885 = vadd.s32 %v881, 3
    %v886 = vand.u32 %v885, 3
    %vm887 = vcmp.lt.s32.totalorder %v886, 2
    %vm888 = vcmp.eq.s32.totalorder %v886, 0
    %v889 = vxor.u32 %v883, 2147483648
    %v890 = vsel %vm888, %v882, %v889
    %vm891 = vcmp.eq.s32.totalorder %v886, 2
    %v892 = vxor.u32 %v882, 2147483648
    %v893 = vsel %vm891, %v892, %v883
    %v894 = vsel %vm887, %v890, %v893
    %v895 = vsel %vm884, nan, %v894
    %896 = vst [vmem:[#allocation6] sm:$0xff] %v583
    %897 = vst [vmem:[#allocation6 + $0x8] sm:$0xff] %v687
    %898 = vst [vmem:[#allocation6 + $0x10] sm:$0xff] %v791
    %899 = vst [vmem:[#allocation6 + $0x18] sm:$0xff] %v895
    // Predicated region
    $region14: #{tpu_custom_call.1} parent=1 // pred_check
      _
    $region15: #{tpu_custom_call.1} parent=1 // pred_check_branch
      %901 = sbr.rel (0) target = $region17
    $region16: #{tpu_custom_call.1} parent=1 // pred_region
      %s903 = ssub.s32 512, 512
      %904 = vsyncadd [#allocation4], %s903
      %s905 = sshll.u32 [#allocation5], 4
      %s906 = int_to_ptr.vmem [resolvable:$true] %s905
      %911 = dma.vmem_to_hbm [thread:$0]  %s906, 512, %s2, [#allocation4], 128, 128, 8
    $region17: #{tpu_custom_call.1} parent=1 // pred_fallthru
      _
    // Predicated region
    $region18: #{tpu_custom_call.1} parent=1 // pred_check
      _
    $region19: #{tpu_custom_call.1} parent=1 // pred_check_branch
      %913 = sbr.rel (0) target = $region21
    $region20: #{tpu_custom_call.1} parent=1 // pred_region
      %s915 = ssub.s32 512, 512
      %916 = vsyncadd [#allocation7], %s915
      %s917 = sshll.u32 [#allocation6], 4
      %s918 = int_to_ptr.vmem [resolvable:$true] %s917
      %923 = dma.vmem_to_hbm [thread:$0]  %s918, 512, %s3, [#allocation7], 128, 128, 8
    $region21: #{tpu_custom_call.1} parent=1 // pred_fallthru
      _
    // Predicated region
    $region22: #{tpu_custom_call.1} parent=1 // pred_check
      _
    $region23: #{tpu_custom_call.1} parent=1 // pred_check_branch
      %925 = sbr.rel (0) target = $region25
    $region24: #{tpu_custom_call.1} parent=1 // pred_region
      %926 = dma.done [#allocation4], 512
    $region25: #{tpu_custom_call.1} parent=1 // pred_fallthru
      _
    // Predicated region
    $region26: #{tpu_custom_call.1} parent=1 // pred_check
      _
    $region27: #{tpu_custom_call.1} parent=1 // pred_check_branch
      %928 = sbr.rel (0) target = $region29
    $region28: #{tpu_custom_call.1} parent=1 // pred_region
      %929 = dma.done [#allocation7], 512
    $region29: #{tpu_custom_call.1} parent=1 // pred_fallthru
      _
    %930 = vsyncpa [#allocation3], 1
    %931 = vsyncpa [#allocation4], 1
    %932 = vsyncpa [#allocation7], 1

</llo_original>
